<compile_context>
chip_gen: v5e
topology: v5e:2x2
jax: 0.10.0
libtpu: 0.0.40
codegen_flags: <defaults>
</compile_context>

<pallas_src>
import functools
import math

import numpy as np
import jax
import jax.numpy as jnp
from jax import lax
from jax.experimental import pallas as pl
from jax.experimental.pallas import tpu as pltpu


# ----------------------------------------------------------------------------
# Small helpers
# ----------------------------------------------------------------------------
def _round_up(x, m):
    return ((x + m - 1) // m) * m


def _pick_tile(dim, preferred, align):
    """Largest multiple of `align` <= preferred that divides `dim`, else full dim."""
    if dim <= preferred:
        return dim
    t = (preferred // align) * align
    while t >= align:
        if dim % t == 0:
            return t
        t -= align
    return dim  # full dim is always a legal block size


def _blk_bytes(shape, dtype):
    """VMEM bytes of one buffered block (roughly accounting for (8,128) padding)."""
    shape = list(shape)
    if len(shape) >= 2:
        shape[-1] = max(_round_up(shape[-1], 128), 128)
        shape[-2] = _round_up(shape[-2], 8)
    n = 1
    for s in shape:
        n *= int(s)
    return n * np.dtype(dtype).itemsize


def _vmem_limit(est_bytes):
    # Sized to the double-buffered blocks with headroom; <= 48 MiB for v7x.
    return int(min(max(2 * est_bytes, 32 * 1024 * 1024), 48 * 1024 * 1024))


# ----------------------------------------------------------------------------
# Kernel 1: tiled linear projection  out = x @ w   (w already (in, out))
# ----------------------------------------------------------------------------
def _matmul_kernel(x_ref, w_ref, o_ref, acc_ref):
    @pl.when(pl.program_id(2) == 0)
    def _init():
        acc_ref[...] = jnp.zeros_like(acc_ref)

    acc_ref[...] += jnp.dot(x_ref[...], w_ref[...],
                            preferred_element_type=jnp.float32)

    @pl.when(pl.program_id(2) == pl.num_programs(2) - 1)
    def _store():
        o_ref[...] = acc_ref[...].astype(o_ref.dtype)


def tiled_matmul(x, w, out_dtype=None):
    """x: (M, K), w: (K, N) -> (M, N). Tiled + pipelined, f32 accumulation."""
    M, K = x.shape
    K2, N = w.shape
    assert K == K2
    out_dtype = x.dtype if out_dtype is None else out_dtype

    tm = _pick_tile(M, 512, 8)
    tn = _pick_tile(N, 256, 128)
    tk = _pick_tile(K, 512, 128)
    grid = (M // tm, N // tn, K // tk)

    est = (2 * (_blk_bytes((tm, tk), x.dtype)
                + _blk_bytes((tk, tn), w.dtype)
                + _blk_bytes((tm, tn), out_dtype))
           + _blk_bytes((tm, tn), jnp.float32))

    return pl.pallas_call(
        _matmul_kernel,
        out_shape=jax.ShapeDtypeStruct((M, N), out_dtype),
        grid_spec=pltpu.PrefetchScalarGridSpec(
            num_scalar_prefetch=0,
            grid=grid,
            in_specs=[
                pl.BlockSpec((tm, tk), lambda i, j, k: (i, k)),
                pl.BlockSpec((tk, tn), lambda i, j, k: (k, j)),
            ],
            out_specs=pl.BlockSpec((tm, tn), lambda i, j, k: (i, j)),
            scratch_shapes=[pltpu.VMEM((tm, tn), jnp.float32)],
        ),
        compiler_params=pltpu.CompilerParams(
            dimension_semantics=("parallel", "parallel", "arbitrary"),
            vmem_limit_bytes=_vmem_limit(est),
        ),
    )(x, w)


# ----------------------------------------------------------------------------
# Kernel 2: flash-style attention (no attention-weights output)
#   grid = (bs*H, S//tq, S//tkv); online softmax in VMEM scratch.
# ----------------------------------------------------------------------------
def _flash_attention_body(q_ref, k_ref, v_ref, mask_ref, o_ref,
                          m_sc, l_sc, acc_sc, *, scale):
    ki = pl.program_id(2)

    @pl.when(ki == 0)
    def _init():
        m_sc[...] = jnp.full_like(m_sc, -jnp.inf)
        l_sc[...] = jnp.zeros_like(l_sc)
        acc_sc[...] = jnp.zeros_like(acc_sc)

    # Scale folded into q: tq*D multiplies instead of tq*tkv.
    q = q_ref[0] * scale                                    # (tq, D)
    # QK^T without materializing a transposed K tile.
    s = lax.dot_general(q, k_ref[0], (((1,), (1,)), ((), ())),
                        preferred_element_type=jnp.float32)  # (tq, tkv) f32
    if mask_ref is not None:
        s = s + mask_ref[0].astype(jnp.float32)

    m_prev = m_sc[...]
    m_new = jnp.maximum(m_prev, jnp.max(s, axis=-1, keepdims=True))
    alpha = jnp.exp(m_prev - m_new)
    p = jnp.exp(s - m_new)
    l_sc[...] = alpha * l_sc[...] + jnp.sum(p, axis=-1, keepdims=True)
    acc_sc[...] = alpha * acc_sc[...] + jnp.dot(
        p.astype(v_ref.dtype), v_ref[0], preferred_element_type=jnp.float32)
    m_sc[...] = m_new

    @pl.when(ki == pl.num_programs(2) - 1)
    def _finalize():
        inv_l = pl.reciprocal(l_sc[...], approx=True)        # EUP slot, ~free
        o_ref[0] = (acc_sc[...] * inv_l).astype(o_ref.dtype)


def _flash_kernel(q_ref, k_ref, v_ref, o_ref, m_sc, l_sc, acc_sc, *, scale):
    _flash_attention_body(q_ref, k_ref, v_ref, None, o_ref,
                          m_sc, l_sc, acc_sc, scale=scale)


def _flash_kernel_masked(q_ref, k_ref, v_ref, mask_ref, o_ref,
                         m_sc, l_sc, acc_sc, *, scale):
    _flash_attention_body(q_ref, k_ref, v_ref, mask_ref, o_ref,
                          m_sc, l_sc, acc_sc, scale=scale)


def flash_attention(q, k, v, mask3, per_head_mask, num_heads, scale, out_dtype):
    """q/k/v: (bs*H, S, D). mask3: None, (bs,S,S) or (bs*H,S,S) additive f32."""
    BH, S, D = q.shape
    tq = _pick_tile(S, 256, 8)
    tkv = _pick_tile(S, 512, 128)
    grid = (BH, S // tq, S // tkv)

    q_spec = pl.BlockSpec((1, tq, D), lambda bh, qi, ki: (bh, qi, 0))
    kv_spec = pl.BlockSpec((1, tkv, D), lambda bh, qi, ki: (bh, ki, 0))
    o_spec = pl.BlockSpec((1, tq, D), lambda bh, qi, ki: (bh, qi, 0))

    in_specs = [q_spec, kv_spec, kv_spec]
    inputs = [q, k, v]
    est = (2 * (_blk_bytes((tq, D), q.dtype) + 2 * _blk_bytes((tkv, D), k.dtype)
                + _blk_bytes((tq, D), out_dtype))
           + 2 * _blk_bytes((tq, 1), jnp.float32)
           + _blk_bytes((tq, D), jnp.float32))

    if mask3 is not None:
        if per_head_mask:
            m_idx = lambda bh, qi, ki: (bh, qi, ki)
        else:
            m_idx = lambda bh, qi, ki: (bh // num_heads, qi, ki)
        in_specs.append(pl.BlockSpec((1, tq, tkv), m_idx))
        inputs.append(mask3)
        est += 2 * _blk_bytes((tq, tkv), jnp.float32)
        kernel = functools.partial(_flash_kernel_masked, scale=scale)
    else:
        kernel = functools.partial(_flash_kernel, scale=scale)

    return pl.pallas_call(
        kernel,
        out_shape=jax.ShapeDtypeStruct((BH, S, D), out_dtype),
        grid_spec=pltpu.PrefetchScalarGridSpec(
            num_scalar_prefetch=0,
            grid=grid,
            in_specs=in_specs,
            out_specs=o_spec,
            scratch_shapes=[
                pltpu.VMEM((tq, 1), jnp.float32),   # running max
                pltpu.VMEM((tq, 1), jnp.float32),   # running denom
                pltpu.VMEM((tq, D), jnp.float32),   # output accumulator
            ],
        ),
        compiler_params=pltpu.CompilerParams(
            dimension_semantics=("parallel", "parallel", "arbitrary"),
            vmem_limit_bytes=_vmem_limit(est),
        ),
    )(*inputs)


# ----------------------------------------------------------------------------
# Kernel 3: attention WITH weights output (only used when output_attentions=True)
#   grid = (bs*H, S//tq); full-row softmax so exact (bs,H,S,S) weights can be
#   written (flash renormalization cannot stream exact weights).
# ----------------------------------------------------------------------------
def _attn_weights_body(q_ref, k_ref, v_ref, mask_ref, o_ref, p_ref, *, scale):
    q = q_ref[0] * scale                                     # (tq, D)
    s = lax.dot_general(q, k_ref[0], (((1,), (1,)), ((), ())),
                        preferred_element_type=jnp.float32)   # (tq, S)
    if mask_ref is not None:
        s = s + mask_ref[0].astype(jnp.float32)
    m = jnp.max(s, axis=-1, keepdims=True)
    e = jnp.exp(s - m)
    denom = jnp.sum(e, axis=-1, keepdims=True)
    p = e * pl.reciprocal(denom, approx=True)
    p_ref[0] = p.astype(p_ref.dtype)
    o_ref[0] = jnp.dot(p.astype(v_ref.dtype), v_ref[0],
                       preferred_element_type=jnp.float32).astype(o_ref.dtype)


def _weights_kernel(q_ref, k_ref, v_ref, o_ref, p_ref, *, scale):
    _attn_weights_body(q_ref, k_ref, v_ref, None, o_ref, p_ref, scale=scale)


def _weights_kernel_masked(q_ref, k_ref, v_ref, mask_ref, o_ref, p_ref, *, scale):
    _attn_weights_body(q_ref, k_ref, v_ref, mask_ref, o_ref, p_ref, scale=scale)


def attention_with_weights(q, k, v, mask3, per_head_mask, num_heads, scale,
                           out_dtype):
    BH, S, D = q.shape
    tq = _pick_tile(S, 256, 8)
    grid = (BH, S // tq)

    in_specs = [
        pl.BlockSpec((1, tq, D), lambda bh, qi: (bh, qi, 0)),
        pl.BlockSpec((1, S, D), lambda bh, qi: (bh, 0, 0)),
        pl.BlockSpec((1, S, D), lambda bh, qi: (bh, 0, 0)),
    ]
    inputs = [q, k, v]
    est = (2 * (_blk_bytes((tq, D), q.dtype) + 2 * _blk_bytes((S, D), k.dtype)
                + _blk_bytes((tq, D), out_dtype)
                + _blk_bytes((tq, S), jnp.float32)))
    if mask3 is not None:
        if per_head_mask:
            m_idx = lambda bh, qi: (bh, qi, 0)
        else:
            m_idx = lambda bh, qi: (bh // num_heads, qi, 0)
        in_specs.append(pl.BlockSpec((1, tq, S), m_idx))
        inputs.append(mask3)
        est += 2 * _blk_bytes((tq, S), jnp.float32)
        kernel = functools.partial(_weights_kernel_masked, scale=scale)
    else:
        kernel = functools.partial(_weights_kernel, scale=scale)

    out, p = pl.pallas_call(
        kernel,
        out_shape=(jax.ShapeDtypeStruct((BH, S, D), out_dtype),
                   jax.ShapeDtypeStruct((BH, S, S), jnp.float32)),
        grid_spec=pltpu.PrefetchScalarGridSpec(
            num_scalar_prefetch=0,
            grid=grid,
            in_specs=in_specs,
            out_specs=[
                pl.BlockSpec((1, tq, D), lambda bh, qi: (bh, qi, 0)),
                pl.BlockSpec((1, tq, S), lambda bh, qi: (bh, qi, 0)),
            ],
        ),
        compiler_params=pltpu.CompilerParams(
            dimension_semantics=("parallel", "parallel"),
            vmem_limit_bytes=_vmem_limit(est),
        ),
    )(*inputs)
    return out, p


# ----------------------------------------------------------------------------
# Parameter prep (done once, outside the hot path)
# ----------------------------------------------------------------------------
def prepare_params(raw):
    """raw: {'w_q','w_k','w_v'} in nn.Linear (out, in) convention + 'num_heads'.
    Pre-transposes and fuses the QKV weights once."""
    w_q, w_k, w_v = raw["w_q"], raw["w_k"], raw["w_v"]
    return {
        "num_heads": raw["num_heads"],
        "w_q_t": w_q.T,
        "w_k_t": w_k.T,
        "w_v_t": w_v.T,
        "w_qkv_t": jnp.concatenate([w_q.T, w_k.T, w_v.T], axis=1),
    }


# ----------------------------------------------------------------------------
# MultiHeadAttention forward
# ----------------------------------------------------------------------------
def multi_head_attention(params, q, k, v, mask=None, output_attentions=False,
                         compute_dtype=None):
    """q/k/v: (bs, seq_len, d_model). Returns (out,) or (out, attn_weights)."""
    H = params["num_heads"]
    bs, S, Dm = q.shape
    if Dm % H != 0:
        raise ValueError("d_model must be divisible by num_heads")
    D = Dm // H
    scale = float(D)  # reference: ScaledDotProductAttention(scale=head_dim)
    in_dtype = q.dtype
    cdt = in_dtype if compute_dtype is None else compute_dtype

    # ---- Q/K/V projection (fused when self-attention) ----
    if (q is k) and (k is v):
        x2d = q.reshape(bs * S, Dm).astype(cdt)
        qkv = tiled_matmul(x2d, params["w_qkv_t"].astype(cdt), out_dtype=cdt)
        qp, kp, vp = qkv[:, :Dm], qkv[:, Dm:2 * Dm], qkv[:, 2 * Dm:]
    else:
        qp = tiled_matmul(q.reshape(bs * S, Dm).astype(cdt),
                          params["w_q_t"].astype(cdt), out_dtype=cdt)
        kp = tiled_matmul(k.reshape(bs * S, Dm).astype(cdt),
                          params["w_k_t"].astype(cdt), out_dtype=cdt)
        vp = tiled_matmul(v.reshape(bs * S, Dm).astype(cdt),
                          params["w_v_t"].astype(cdt), out_dtype=cdt)

    # TODO(synk): head-merged (bs, S, H*D) attention blocks would remove these
    # HBM transposes and give lane-dense output stores; kept per-(b,h) blocks
    # for robust Mosaic lowering.
    def split_heads(x2d_):
        return x2d_.reshape(bs, S, H, D).transpose(0, 2, 1, 3).reshape(bs * H, S, D)

    qh, kh, vh = split_heads(qp), split_heads(kp), split_heads(vp)

    # ---- mask handling (no zero-mask is ever materialized) ----
    mask3 = None
    per_head_mask = False
    if mask is not None:
        m = jnp.asarray(mask)
        if m.dtype == jnp.bool_:
            # Boolean masks are a no-op in the reference (masked_fill result
            # is discarded), so they are intentionally ignored here.
            pass
        else:
            m = m.astype(jnp.float32)
            while m.ndim < 4:
                m = m[None]
            if m.shape[1] == 1:                     # no per-head dependence
                mask3 = jnp.broadcast_to(m[:, 0], (bs, S, S))
                per_head_mask = False
            else:
                mask3 = jnp.broadcast_to(m, (bs, H, S, S)).reshape(bs * H, S, S)
                per_head_mask = True

    # ---- attention ----
    if output_attentions:
        out_h, p_h = attention_with_weights(qh, kh, vh, mask3, per_head_mask,
                                            H, scale, in_dtype)
    else:
        out_h = flash_attention(qh, kh, vh, mask3, per_head_mask,
                                H, scale, in_dtype)
        p_h = None

    out = out_h.reshape(bs, H, S, D).transpose(0, 2, 1, 3).reshape(bs, S, Dm)

    if output_attentions:
        return out, p_h.reshape(bs, H, S, S)
    return (out,)


# ----------------------------------------------------------------------------
# Pure-JAX reference for correctness checking
# ----------------------------------------------------------------------------
def reference_mha(raw_params, q, k, v, mask=None):
    w_q, w_k, w_v = raw_params["w_q"], raw_params["w_k"], raw_params["w_v"]
    bs, S, Dm = q.shape
    H = raw_params["num_heads"]
    D = Dm // H
    scale = float(D)

    def proj(x, w):
        return jnp.einsum("bsd,od->bso", x, w)

    def heads(x):
        return x.reshape(bs, S, H, D).transpose(0, 2, 1, 3)

    qh, kh, vh = heads(proj(q, w_q)), heads(proj(k, w_k)), heads(proj(v, w_v))
    sims = jnp.einsum("bhqd,bhkd->bhqk", qh, kh) * scale
    if mask is not None and jnp.asarray(mask).dtype != jnp.bool_:
        sims = sims + jnp.asarray(mask, jnp.float32)
    p = jax.nn.softmax(sims, axis=-1)
    o = jnp.einsum("bhqk,bhkd->bhqd", p, vh)
    return o.transpose(0, 2, 1, 3).reshape(bs, S, Dm), p


if __name__ == "__main__":
    bs, seq_len, d_model, num_heads = 2, 8, 32, 4

    key = jax.random.PRNGKey(0)
    k_wq, k_wk, k_wv, k_x, k_m = jax.random.split(key, 5)

    # nn.Linear default init ~ U(-1/sqrt(in), 1/sqrt(in)); deterministic here.
    bound = 1.0 / math.sqrt(d_model)
    raw = {
        "w_q": jax.random.uniform(k_wq, (d_model, d_model), jnp.float32, -bound, bound),
        "w_k": jax.random.uniform(k_wk, (d_model, d_model), jnp.float32, -bound, bound),
        "w_v": jax.random.uniform(k_wv, (d_model, d_model), jnp.float32, -bound, bound),
        "num_heads": num_heads,
    }
    params = prepare_params(raw)

    # Modest activation scale keeps exp() well-conditioned given the module's
    # unusual scale=head_dim (multiply) convention.
    x = 0.25 * jax.random.normal(k_x, (bs, seq_len, d_model), jnp.float32)

    ref_out, ref_p = reference_mha(raw, x, x, x)

    # --- Run A: f32, attention weights requested ---
    out_a, p_a = multi_head_attention(params, x, x, x, mask=None,
                                      output_attentions=True)
    out_a = jax.block_until_ready(out_a)
    p_a = jax.block_until_ready(p_a)
    assert out_a.shape == (bs, seq_len, d_model)
    assert p_a.shape == (bs, num_heads, seq_len, seq_len)
    assert jnp.allclose(out_a, ref_out, atol=1e-3, rtol=1e-3), "out mismatch (weights path)"
    assert jnp.allclose(p_a, ref_p, atol=1e-3, rtol=1e-3), "attn weights mismatch"

    # --- Run B: f32, flash path (no weights output) ---
    (out_b,) = multi_head_attention(params, x, x, x, mask=None,
                                    output_attentions=False)
    out_b = jax.block_until_ready(out_b)
    assert out_b.shape == (bs, seq_len, d_model)
    assert jnp.allclose(out_b, ref_out, atol=1e-3, rtol=1e-3), "out mismatch (flash path)"

    # --- Run C: additive float mask ---
    add_mask = jax.random.normal(k_m, (bs, 1, seq_len, seq_len), jnp.float32)
    ref_out_m, _ = reference_mha(raw, x, x, x, mask=add_mask)
    (out_c,) = multi_head_attention(params, x, x, x, mask=add_mask,
                                    output_attentions=False)
    out_c = jax.block_until_ready(out_c)
    assert jnp.allclose(out_c, ref_out_m, atol=1e-3, rtol=1e-3), "out mismatch (masked)"

    # --- Run D: bf16 matmul inputs (f32 accumulation), loose tolerance ---
    (out_d,) = multi_head_attention(params, x, x, x, mask=None,
                                    output_attentions=False,
                                    compute_dtype=jnp.bfloat16)
    out_d = jax.block_until_ready(out_d)
    assert out_d.shape == (bs, seq_len, d_model)
    assert bool(jnp.all(jnp.isfinite(out_d)))
    assert jnp.allclose(out_d.astype(jnp.float32), ref_out, atol=5e-2, rtol=5e-2), \
        "out mismatch (bf16 path)"

    print("KERNEL_OK")
</pallas_src>

<mosaic_0001>
module attributes {stable_mosaic.version = 11 : i64} {
  func.func @_matmul_kernel(%arg0: i32, %arg1: i32, %arg2: i32, %arg3: memref<16x32xf32, #tpu.memory_space<vmem>>, %arg4: memref<32x96xf32, #tpu.memory_space<vmem>>, %arg5: memref<16x96xf32, #tpu.memory_space<vmem>>, %arg6: memref<16x96xf32, #tpu.memory_space<vmem>>) attributes {dimension_semantics = [#tpu.dimension_semantics<parallel>, #tpu.dimension_semantics<parallel>, #tpu.dimension_semantics<arbitrary>], iteration_bounds = array<i64: 1, 1, 1>, scalar_prefetch = 0 : i64, scratch_operands = 1 : i64, tpu.core_type = #tpu.core_type<tc>, window_params = [{transform_indices = @transform_0, window_bounds = array<i64: 16, 32>}, {transform_indices = @transform_1, window_bounds = array<i64: 32, 96>}, {transform_indices = @transform_2, window_bounds = array<i64: 16, 96>}]} {
    %c0_i32 = arith.constant 0 : i32
    %0 = arith.cmpi eq, %arg2, %c0_i32 : i32
    %1 = arith.extui %0 : i1 to i32
    %c0_i32_0 = arith.constant 0 : i32
    %2 = arith.cmpi ne, %1, %c0_i32_0 : i32
    scf.if %2 {
      %cst_10 = arith.constant 0.000000e+00 : f32
      %12 = vector.broadcast %cst_10 : f32 to vector<16x96xf32>
      %c0_11 = arith.constant 0 : index
      %c0_12 = arith.constant 0 : index
      %13 = vector.load %arg6[%c0_11, %c0_12] : memref<16x96xf32, #tpu.memory_space<vmem>>, vector<16x96xf32>
      tpu.vector_store %arg6[%c0_11, %c0_12], %12 {strides = array<i32>} : memref<16x96xf32, #tpu.memory_space<vmem>>, vector<16x96xf32>,
    } else {
    }
    %c0 = arith.constant 0 : index
    %c0_1 = arith.constant 0 : index
    %3 = vector.load %arg6[%c0, %c0_1] : memref<16x96xf32, #tpu.memory_space<vmem>>, vector<16x96xf32>
    %c0_2 = arith.constant 0 : index
    %c0_3 = arith.constant 0 : index
    %4 = vector.load %arg3[%c0_2, %c0_3] : memref<16x32xf32, #tpu.memory_space<vmem>>, vector<16x32xf32>
    %c0_4 = arith.constant 0 : index
    %c0_5 = arith.constant 0 : index
    %5 = vector.load %arg4[%c0_4, %c0_5] : memref<32x96xf32, #tpu.memory_space<vmem>>, vector<32x96xf32>
    %cst = arith.constant dense<0.000000e+00> : vector<16x96xf32>
    %6 = tpu.matmul %4, %5, %cst {dimension_numbers = #tpu.dot_dimension_numbers<[1], [0], [0], [1], [0, 0, 1, 1], [], []>} : vector<16x32xf32>, vector<32x96xf32>, vector<16x96xf32> -> vector<16x96xf32>
    %7 = arith.addf %3, %6 : vector<16x96xf32>
    %c0_6 = arith.constant 0 : index
    %c0_7 = arith.constant 0 : index
    %8 = vector.load %arg6[%c0_6, %c0_7] : memref<16x96xf32, #tpu.memory_space<vmem>>, vector<16x96xf32>
    tpu.vector_store %arg6[%c0_6, %c0_7], %7 {strides = array<i32>} : memref<16x96xf32, #tpu.memory_space<vmem>>, vector<16x96xf32>,
    %c0_i32_8 = arith.constant 0 : i32
    %9 = arith.cmpi eq, %arg2, %c0_i32_8 : i32
    %10 = arith.extui %9 : i1 to i32
    %c0_i32_9 = arith.constant 0 : i32
    %11 = arith.cmpi ne, %10, %c0_i32_9 : i32
    scf.if %11 {
      %c0_10 = arith.constant 0 : index
      %c0_11 = arith.constant 0 : index
      %12 = vector.load %arg6[%c0_10, %c0_11] : memref<16x96xf32, #tpu.memory_space<vmem>>, vector<16x96xf32>
      %c0_12 = arith.constant 0 : index
      %c0_13 = arith.constant 0 : index
      %13 = vector.load %arg5[%c0_12, %c0_13] : memref<16x96xf32, #tpu.memory_space<vmem>>, vector<16x96xf32>
      tpu.vector_store %arg5[%c0_12, %c0_13], %12 {strides = array<i32>} : memref<16x96xf32, #tpu.memory_space<vmem>>, vector<16x96xf32>,
    } else {
    }
    return
  }
  func.func @transform_0(%arg0: i32, %arg1: i32, %arg2: i32) -> (i32, i32) {
    %c0_i32 = arith.constant 0 : i32
    return %arg0, %arg2 : i32, i32
  }
  func.func @transform_1(%arg0: i32, %arg1: i32, %arg2: i32) -> (i32, i32) {
    %c0_i32 = arith.constant 0 : i32
    return %arg2, %arg1 : i32, i32
  }
  func.func @transform_2(%arg0: i32, %arg1: i32, %arg2: i32) -> (i32, i32) {
    %c0_i32 = arith.constant 0 : i32
    return %arg0, %arg1 : i32, i32
  }
}

</mosaic_0001>

<llo_original>
// kernel: tpu_custom_call.1
$region0: #{tpu_custom_call.1}
  #allocation0 [shape = 'u32[]', space=smem, size = 0x4, offset = 0x4, fixed_abs, tag = 'smem constant byte address 0x4 - core index']
  #allocation1 [shape = 'u32[72,128]{1,0:T(1,128)}', space=vmem, size = 0x9000, scoped, tag = 'internal scratch']
  #allocation2 [shape = 'f32[16,96]{1,0:T(8,128)}', space=vmem, size = 0x2000, scoped, tag = 'scratch operand']
  %s0 = inlined_call_operand.hbm [shape: f32[16,32], index: 0, kind: input, shape index: {}]
  %s1 = inlined_call_operand.hbm [shape: f32[32,96], index: 1, kind: input, shape index: {}]
  %s2 = inlined_call_operand.hbm [shape: f32[16,96], index: 2, kind: output, shape index: {}]
  %s3 = sld [smem:[#allocation0]]
  $region34: #{tpu_custom_call.1} parent=0
    _
  %s5 = ssub.s32 1, %s3
  %s6 = scalar_select 0, %s5, %s3
  $region1: #{tpu_custom_call.1} parent=0
    #allocation3 [shape = 'u8[8192]{0}', space=vmem, size = 0x2000, scoped, tag = 'input window, operand 0, single buffered']
    #allocation4 [shape = 's32[1]{0}', space=sflag, size = 0x4, scoped, tag = 'scoped memory for tpu_custom_call.1']
    #allocation5 [shape = 's32[1]{0}', space=sflag, size = 0x4, scoped, tag = 'scoped memory for tpu_custom_call.1']
    #allocation6 [shape = 'u8[16384]{0}', space=vmem, size = 0x4000, scoped, tag = 'input window, operand 1, single buffered']
    #allocation7 [shape = 's32[1]{0}', space=sflag, size = 0x4, scoped, tag = 'scoped memory for tpu_custom_call.1']
    #allocation8 [shape = 'u8[8192]{0}', space=vmem, size = 0x2000, scoped, tag = 'output window, operand 0, single buffered']
    %7 = vsyncpa [#allocation4], 0
    %8 = vsyncpa [#allocation7], 0
    %9 = vsyncpa [#allocation5], 0
    // Predicated region
    $region2: #{tpu_custom_call.1} parent=1 // pred_check
      _
    $region3: #{tpu_custom_call.1} parent=1 // pred_check_branch
      %11 = sbr.rel (0) target = $region5
    $region4: #{tpu_custom_call.1} parent=1 // pred_region
      %13 = vsyncadd [#allocation4], 0
      %s14 = sshll.u32 %s0, 4
      %s15 = int_to_ptr.hbm [resolvable:$true] %s14
      %s16 = sshll.u32 [#allocation3], 4
      %s17 = int_to_ptr.vmem [resolvable:$true] %s16
      %22 = dma.hbm_to_vmem [thread:$0]  %s15, 256, %s17, [#allocation4], 128, 128, 8
    $region5: #{tpu_custom_call.1} parent=1 // pred_fallthru
      _
    // Predicated region
    $region6: #{tpu_custom_call.1} parent=1 // pred_check
      _
    $region7: #{tpu_custom_call.1} parent=1 // pred_check_branch
      %24 = sbr.rel (0) target = $region9
    $region8: #{tpu_custom_call.1} parent=1 // pred_region
      %26 = vsyncadd [#allocation7], 0
      %s27 = sshll.u32 %s1, 4
      %s28 = int_to_ptr.hbm [resolvable:$true] %s27
      %s29 = sshll.u32 [#allocation6], 4
      %s30 = int_to_ptr.vmem [resolvable:$true] %s29
      %35 = dma.hbm_to_vmem [thread:$0]  %s28, 512, %s30, [#allocation7], 128, 128, 8
    $region9: #{tpu_custom_call.1} parent=1 // pred_fallthru
      _
    // Predicated region
    $region10: #{tpu_custom_call.1} parent=1 // pred_check
      _
    $region11: #{tpu_custom_call.1} parent=1 // pred_check_branch
      %37 = sbr.rel (0) target = $region13
    $region12: #{tpu_custom_call.1} parent=1 // pred_region
      %39 = dma.done [#allocation4], 256
    $region13: #{tpu_custom_call.1} parent=1 // pred_fallthru
      _
    // Predicated region
    $region14: #{tpu_custom_call.1} parent=1 // pred_check
      _
    $region15: #{tpu_custom_call.1} parent=1 // pred_check_branch
      %41 = sbr.rel (0) target = $region17
    $region16: #{tpu_custom_call.1} parent=1 // pred_region
      %43 = dma.done [#allocation7], 512
    $region17: #{tpu_custom_call.1} parent=1 // pred_fallthru
      _
    %p44 = scmp.eq.s32.totalorder 0, 0
    // Predicated region
    $region18: #{tpu_custom_call.1} parent=1 // pred_check
      %p45 = pneg %p44
    $region19: #{tpu_custom_call.1} parent=1 // pred_check_branch
      %47 = sbr.rel (%p45) target = $region21
    $region20: #{tpu_custom_call.1} parent=1 // pred_region
      %vm48 = vcmask 785408
      %49 = vst.msk [vmem:[#allocation2] sm:$0xff] %vm48, 0.0
      %50 = vst.msk [vmem:[#allocation2 + $0x8] sm:$0xff] %vm48, 0.0
    $region21: #{tpu_custom_call.1} parent=1 // pred_fallthru
      _
    %v51 = vld [vmem:[#allocation2] sm:$0xff]
    %v52 = vld [vmem:[#allocation2 + $0x8] sm:$0xff]
    %v53 = vld [vmem:[#allocation3] sm:$0xff]
    %v54 = vld [vmem:[#allocation3 + $0x8] sm:$0xff]
    %v55 = vld [vmem:[#allocation6] sm:$0xff]
    %v56 = vld [vmem:[#allocation6 + $0x8] sm:$0xff]
    %v57 = vld [vmem:[#allocation6 + $0x10] sm:$0xff]
    %v58 = vld [vmem:[#allocation6 + $0x18] sm:$0xff]
    %vm59 = vcmask 261120
    %v61 = vsel %vm59, %v53, 0
    %v64 = vsel %vm59, %v54, 0
    %66 = vmatpush.msra.mxu0 0.0
    %67 = vmatpush.msra.mxu0 0.0
    %68 = vmatpush.msra.mxu0 0.0
    %69 = vmatpush.msra.mxu0 0.0
    %70 = vmatpush.msra.mxu0 0.0
    %71 = vmatpush.msra.mxu0 0.0
    %72 = vmatpush.msra.mxu0 0.0
    %73 = vmatpush.msra.mxu0 0.0
    %74 = vmatpush.msra.mxu0 0.0
    %75 = vmatpush.msra.mxu0 0.0
    %76 = vmatpush.msra.mxu0 0.0
    %77 = vmatpush.msra.mxu0 0.0
    %78 = vmatpush.msra.mxu0 %v58
    %79 = vmatpush.msra.mxu0 %v57
    %80 = vmatpush.msra.mxu0 %v56
    %81 = vmatpush.msra.mxu0 %v55
    %82 = vmatmul.f32.gmra.mxu0 %v61
    %v83 = vpop.f32.mrf.mxu0
    %v84 = vadd.f32 0.0, %v83
    %85 = vmatmul.f32.gmra.mxu0 %v64
    %v86 = vpop.f32.mrf.mxu0
    %v87 = vadd.f32 0.0, %v86
    %88 = vdwg.mxu0
    %v89 = vadd.f32 %v51, %v84
    %v90 = vadd.f32 %v52, %v87
    %vm91 = vcmask 785408
    %92 = vst.msk [vmem:[#allocation2] sm:$0xff] %vm91, %v89
    %93 = vst.msk [vmem:[#allocation2 + $0x8] sm:$0xff] %vm91, %v90
    // Predicated region
    $region22: #{tpu_custom_call.1} parent=1 // pred_check
      %p94 = pneg %p44
    $region23: #{tpu_custom_call.1} parent=1 // pred_check_branch
      %96 = sbr.rel (%p94) target = $region25
    $region24: #{tpu_custom_call.1} parent=1 // pred_region
      %v97 = vld [vmem:[#allocation2] sm:$0xff]
      %v98 = vld [vmem:[#allocation2 + $0x8] sm:$0xff]
      %99 = vst.msk [vmem:[#allocation8] sm:$0xff] %vm91, %v97
      %100 = vst.msk [vmem:[#allocation8 + $0x8] sm:$0xff] %vm91, %v98
    $region25: #{tpu_custom_call.1} parent=1 // pred_fallthru
      _
    // Predicated region
    $region26: #{tpu_custom_call.1} parent=1 // pred_check
      _
    $region27: #{tpu_custom_call.1} parent=1 // pred_check_branch
      %102 = sbr.rel (0) target = $region29
    $region28: #{tpu_custom_call.1} parent=1 // pred_region
      %104 = vsyncadd [#allocation5], 0
      %s105 = sshll.u32 [#allocation8], 4
      %s106 = int_to_ptr.vmem [resolvable:$true] %s105
      %s107 = sshll.u32 %s2, 4
      %s108 = int_to_ptr.hbm [resolvable:$true] %s107
      %113 = dma.vmem_to_hbm [thread:$0]  %s106, 256, %s108, [#allocation5], 128, 128, 8
    $region29: #{tpu_custom_call.1} parent=1 // pred_fallthru
      _
    // Predicated region
    $region30: #{tpu_custom_call.1} parent=1 // pred_check
      _
    $region31: #{tpu_custom_call.1} parent=1 // pred_check_branch
      %115 = sbr.rel (0) target = $region33
    $region32: #{tpu_custom_call.1} parent=1 // pred_region
      %117 = dma.done [#allocation5], 256
    $region33: #{tpu_custom_call.1} parent=1 // pred_fallthru
      _
    %118 = vsyncpa [#allocation4], 1
    %119 = vsyncpa [#allocation7], 1
    %120 = vsyncpa [#allocation5], 1

</llo_original>
